<compile_context>
chip_gen: v7x
topology: tpu7x:2x2x1
jax: 0.10.0
libtpu: 0.0.40
codegen_flags: <defaults>
</compile_context>

<pallas_src>
import functools
import math

import jax
import jax.numpy as jnp
from jax import lax
from jax.experimental import pallas as pl
from jax.experimental.pallas import tpu as pltpu


VMEM_LIMIT = 48 * 1024 * 1024          # explicit scoped-VMEM cap (safe on v5e/v6e/v7x)
TAP_RESIDENT_LIMIT = 12 * 1024 * 1024  # per-buffer cap for the VMEM-resident 3x3 input


# ----------------------------------------------------------------------------
# small helpers
# ----------------------------------------------------------------------------
def _round_up(x, m):
    return (x + m - 1) // m * m


def _cp(c):
    """Channel count padded to a lane-dense multiple of 128."""
    return max(128, _round_up(c, 128))


def _choose_tiles(m):
    """Return (Mp, tm): padded row count and M-tile; >=2 blocks when possible."""
    if m <= 8:
        return 8, 8
    if m <= 2048:
        mp = _round_up(m, 16)
        return mp, mp // 2
    return _round_up(m, 512), 512


def _apply_act(x, act):
    if act == "relu":
        return jnp.maximum(x, 0.0)
    if act == "tanh":
        return jnp.tanh(x)
    return x


# ----------------------------------------------------------------------------
# Pallas kernels
# ----------------------------------------------------------------------------
def _matmul_bias_act_kernel(x_ref, w_ref, b_ref, o_ref, *, act):
    """(tm, K) bf16 @ (K, N) bf16 -> f32 epilogue (bias + act) -> bf16."""
    acc = jnp.dot(x_ref[...], w_ref[...], preferred_element_type=jnp.float32)
    acc = acc + b_ref[...]
    acc = _apply_act(acc, act)
    o_ref[...] = acc.astype(o_ref.dtype)


def _matmul_call(x, w, b, *, tm, act):
    mp, kp = x.shape
    np_ = w.shape[1]
    return pl.pallas_call(
        functools.partial(_matmul_bias_act_kernel, act=act),
        out_shape=jax.ShapeDtypeStruct((mp, np_), jnp.bfloat16),
        grid_spec=pltpu.PrefetchScalarGridSpec(
            num_scalar_prefetch=0,
            grid=(mp // tm,),
            in_specs=[
                pl.BlockSpec((tm, kp), lambda i: (i, 0)),
                pl.BlockSpec((kp, np_), lambda i: (0, 0)),
                pl.BlockSpec((1, np_), lambda i: (0, 0)),
            ],
            out_specs=pl.BlockSpec((tm, np_), lambda i: (i, 0)),
        ),
        compiler_params=pltpu.CompilerParams(
            dimension_semantics=("parallel",),
            vmem_limit_bytes=VMEM_LIMIT),
    )(x, w, b)


def _conv_tap_kernel(x_ref, w_ref, b_ref, o_ref, acc_ref, *, tm, wrow, kw, act):
    """3x3 conv as a 9-tap MXU accumulation over a VMEM-resident flat input.

    x_ref : (Min, Cp) f32, whole spatially-padded image flattened (resident).
    w_ref : (Cp, Np) bf16, weights of the current tap.
    acc   : (tm, Np) f32 scratch accumulated across the tap grid axis.
    """
    i = pl.program_id(0)
    t = pl.program_id(1)

    @pl.when(t == 0)
    def _():
        acc_ref[...] = jnp.zeros_like(acc_ref)

    di = t // kw
    dj = t - di * kw
    off = i * tm + di * wrow + dj
    x = x_ref[pl.ds(off, tm), :].astype(jnp.bfloat16)
    acc_ref[...] += jnp.dot(x, w_ref[...], preferred_element_type=jnp.float32)

    @pl.when(t == pl.num_programs(1) - 1)
    def _():
        acc = acc_ref[...] + b_ref[...]
        acc = _apply_act(acc, act)
        o_ref[...] = acc.astype(o_ref.dtype)


def _conv_tap_call(xf, w2d, b, *, tm, mp, wrow, k, act):
    m_in, cp = xf.shape
    np_ = w2d.shape[1]
    kernel = functools.partial(_conv_tap_kernel, tm=tm, wrow=wrow, kw=k, act=act)
    return pl.pallas_call(
        kernel,
        out_shape=jax.ShapeDtypeStruct((mp, np_), jnp.bfloat16),
        grid_spec=pltpu.PrefetchScalarGridSpec(
            num_scalar_prefetch=0,
            grid=(mp // tm, k * k),
            in_specs=[
                pl.BlockSpec((m_in, cp), lambda i, t: (0, 0)),   # resident input
                pl.BlockSpec((cp, np_), lambda i, t: (t, 0)),    # per-tap weights
                pl.BlockSpec((1, np_), lambda i, t: (0, 0)),
            ],
            out_specs=pl.BlockSpec((tm, np_), lambda i, t: (i, 0)),
            scratch_shapes=[pltpu.VMEM((tm, np_), jnp.float32)],
        ),
        compiler_params=pltpu.CompilerParams(
            dimension_semantics=("parallel", "arbitrary"),
            vmem_limit_bytes=VMEM_LIMIT),
    )(xf, w2d, b)


def _bn_stats_kernel(x_ref, o_ref, sum_ref, ssq_ref, *, inv_m):
    i = pl.program_id(0)

    @pl.when(i == 0)
    def _():
        sum_ref[...] = jnp.zeros_like(sum_ref)
        ssq_ref[...] = jnp.zeros_like(ssq_ref)

    x = x_ref[...].astype(jnp.float32)
    sum_ref[...] += jnp.sum(x, axis=0, keepdims=True)
    ssq_ref[...] += jnp.sum(x * x, axis=0, keepdims=True)

    @pl.when(i == pl.num_programs(0) - 1)
    def _():
        mean = sum_ref[...] * inv_m
        var = jnp.maximum(ssq_ref[...] * inv_m - mean * mean, 0.0)
        o_ref[0:1, :] = mean
        o_ref[1:2, :] = var


def _bn_stats_call(xf, *, tm, m_real):
    mp, cp = xf.shape
    kernel = functools.partial(_bn_stats_kernel, inv_m=1.0 / float(m_real))
    return pl.pallas_call(
        kernel,
        out_shape=jax.ShapeDtypeStruct((2, cp), jnp.float32),
        grid_spec=pltpu.PrefetchScalarGridSpec(
            num_scalar_prefetch=0,
            grid=(mp // tm,),
            in_specs=[pl.BlockSpec((tm, cp), lambda i: (i, 0))],
            out_specs=pl.BlockSpec((2, cp), lambda i: (0, 0)),
            scratch_shapes=[pltpu.VMEM((1, cp), jnp.float32),
                            pltpu.VMEM((1, cp), jnp.float32)],
        ),
        compiler_params=pltpu.CompilerParams(
            dimension_semantics=("arbitrary",),
            vmem_limit_bytes=VMEM_LIMIT),
    )(xf)


def _bn_norm_kernel(x_ref, s_ref, g_ref, b_ref, o_ref, *, relu, eps):
    mean = s_ref[0:1, :]
    var = s_ref[1:2, :]
    scale = g_ref[...] * lax.rsqrt(var + eps)
    shift = b_ref[...] - mean * scale
    y = x_ref[...].astype(jnp.float32) * scale + shift
    if relu:
        y = jnp.maximum(y, 0.0)
    o_ref[...] = y.astype(o_ref.dtype)


def _bn_norm_call(xf, stats, gamma, beta, *, tm, relu):
    mp, cp = xf.shape
    kernel = functools.partial(_bn_norm_kernel, relu=relu, eps=1e-5)
    return pl.pallas_call(
        kernel,
        out_shape=jax.ShapeDtypeStruct((mp, cp), jnp.bfloat16),
        grid_spec=pltpu.PrefetchScalarGridSpec(
            num_scalar_prefetch=0,
            grid=(mp // tm,),
            in_specs=[
                pl.BlockSpec((tm, cp), lambda i: (i, 0)),
                pl.BlockSpec((2, cp), lambda i: (0, 0)),
                pl.BlockSpec((1, cp), lambda i: (0, 0)),
                pl.BlockSpec((1, cp), lambda i: (0, 0)),
            ],
            out_specs=pl.BlockSpec((tm, cp), lambda i: (i, 0)),
        ),
        compiler_params=pltpu.CompilerParams(
            dimension_semantics=("parallel",),
            vmem_limit_bytes=VMEM_LIMIT),
    )(xf, stats, gamma, beta)


# ----------------------------------------------------------------------------
# layer wrappers (glue around the Pallas kernels, all under jit)
# ----------------------------------------------------------------------------
def conv1x1(p, x, act="none"):
    b, h, wd, cp = x.shape
    m = b * h * wd
    mp, tm = _choose_tiles(m)
    xf = x.reshape(m, cp)
    xf = jnp.pad(xf, ((0, mp - m), (0, 0)))
    np_ = p["w"].shape[-1]
    out = _matmul_call(xf, p["w"], p["b"], tm=tm, act=act)
    return out[:m].reshape(b, h, wd, np_)


def conv3x3(p, x, padding=0, act="none"):
    """Stride-1 KxK conv (K derived from weight shape) with fused bias/act."""
    taps, cp, np_ = p["w"].shape
    k = int(round(math.sqrt(taps)))
    if padding:
        x = jnp.pad(x, ((0, 0), (padding, padding), (padding, padding), (0, 0)))
    b, hp, wp, _ = x.shape
    ho, wo = hp - k + 1, wp - k + 1
    m = b * hp * wp
    mp, tm = _choose_tiles(m)
    halo = (k - 1) * wp + (k - 1)
    m_in = _round_up(mp + halo, 8)
    w2d = p["w"].reshape(taps * cp, np_)

    if m_in * cp * 4 > TAP_RESIDENT_LIMIT:
        # Fallback for very large spatial extents: materialized im2col.
        patches, _, _ = _im2col(x, k, k, 1, 0)
        mo = b * ho * wo
        mop, tmo = _choose_tiles(mo)
        pf = jnp.pad(patches.reshape(mo, taps * cp), ((0, mop - mo), (0, 0)))
        out = _matmul_call(pf, w2d, p["b"], tm=tmo, act=act)
        return out[:mo].reshape(b, ho, wo, np_)

    xf = x.astype(jnp.float32).reshape(m, cp)
    xf = jnp.pad(xf, ((0, m_in - m), (0, 0)))
    out = _conv_tap_call(xf, w2d, p["b"], tm=tm, mp=mp, wrow=wp, k=k, act=act)
    return out[:m].reshape(b, hp, wp, np_)[:, :ho, :wo, :]


def conv_im2col_strided(p, x, k, stride, cin_real, act="none"):
    """Strided valid conv (only the encoder stem) via im2col on real channels."""
    xr = x[..., :cin_real]
    patches, ho, wo = _im2col(xr, k, k, stride, 0)
    b = x.shape[0]
    m = b * ho * wo
    kreal = patches.shape[-1]
    kp, np_ = p["w"].shape
    mp, tm = _choose_tiles(m)
    pf = jnp.pad(patches.reshape(m, kreal), ((0, mp - m), (0, kp - kreal)))
    out = _matmul_call(pf, p["w"], p["b"], tm=tm, act=act)
    return out[:m].reshape(b, ho, wo, np_)


def bn_relu(p, x, relu=True):
    """BatchNorm2d (training-mode batch statistics, affine) + optional ReLU."""
    b, h, wd, cp = x.shape
    m = b * h * wd
    mp, tm = _choose_tiles(m)
    xf = x.reshape(m, cp)
    xf = jnp.pad(xf, ((0, mp - m), (0, 0)))
    stats = _bn_stats_call(xf, tm=tm, m_real=m)
    y = _bn_norm_call(xf, stats, p["gamma"], p["beta"], tm=tm, relu=relu)
    return y[:m].reshape(b, h, wd, cp)


def _im2col(x, kh, kw, stride, padding):
    if padding > 0:
        x = jnp.pad(x, ((0, 0), (padding, padding), (padding, padding), (0, 0)))
    _, hp, wp, _ = x.shape
    ho = (hp - kh) // stride + 1
    wo = (wp - kw) // stride + 1
    cols = []
    for i in range(kh):
        for j in range(kw):
            cols.append(x[:, i:i + stride * (ho - 1) + 1:stride,
                          j:j + stride * (wo - 1) + 1:stride, :])
    return jnp.concatenate(cols, axis=-1), ho, wo


def maxpool3x3s2(x):
    _, h, w, _ = x.shape
    ho = (h - 3) // 2 + 1
    wo = (w - 3) // 2 + 1
    out = None
    for i in range(3):
        for j in range(3):
            s = x[:, i:i + 2 * (ho - 1) + 1:2, j:j + 2 * (wo - 1) + 1:2, :]
            out = s if out is None else jnp.maximum(out, s)
    return out


def upsample_nearest(x, s):
    return jnp.repeat(jnp.repeat(x, s, axis=1), s, axis=2)


def reflect_pad(x, pad_h, pad_w):
    return jnp.pad(x, ((0, 0), pad_h, pad_w, (0, 0)), mode="reflect")


# ----------------------------------------------------------------------------
# Parameter initialization (deterministic, synthetic; pre-padded lane-dense)
# ----------------------------------------------------------------------------
class KeyGen:
    def __init__(self, key):
        self.key = key

    def __call__(self):
        self.key, k = jax.random.split(self.key)
        return k


def _seg(c):
    return ((c, _cp(c)),)


def init_conv_tap(kg, k, cin_segs, cout):
    """KxK stride-1 conv weights in padded per-tap layout: (K*K, Kin_pad, Np)."""
    taps = k * k
    kin = sum(p for _, p in cin_segs)
    cin_real = sum(r for r, _ in cin_segs)
    np_ = _cp(cout)
    w = jax.random.normal(kg(), (taps, kin, np_), jnp.float32)
    w = w / math.sqrt(taps * cin_real)
    rmask = jnp.concatenate([(jnp.arange(p) < r) for r, p in cin_segs])
    cmask = jnp.arange(np_) < cout
    w = w * rmask.astype(jnp.float32)[None, :, None]
    w = w * cmask.astype(jnp.float32)[None, None, :]
    return {"w": w.astype(jnp.bfloat16), "b": jnp.zeros((1, np_), jnp.float32)}


def init_conv_1x1(kg, cin_segs, cout):
    p = init_conv_tap(kg, 1, cin_segs, cout)
    p["w"] = p["w"][0]                      # (Kin_pad, Np)
    return p


def init_conv_im2col(kg, k, cin_real, cout):
    kreal = k * k * cin_real
    kp = _cp(kreal)
    np_ = _cp(cout)
    w = jax.random.normal(kg(), (kp, np_), jnp.float32) / math.sqrt(kreal)
    w = w * (jnp.arange(kp) < kreal).astype(jnp.float32)[:, None]
    w = w * (jnp.arange(np_) < cout).astype(jnp.float32)[None, :]
    return {"w": w.astype(jnp.bfloat16), "b": jnp.zeros((1, np_), jnp.float32)}


def init_bn(c):
    cp = _cp(c)
    gamma = (jnp.arange(cp) < c).astype(jnp.float32).reshape(1, cp)
    return {"gamma": gamma, "beta": jnp.zeros((1, cp), jnp.float32)}


def init_fpn(kg, n):
    p = {}
    p["toRGB"] = init_conv_1x1(kg, _seg(n), 3)
    # synthetic stand-in for the InceptionResNetV2 encoder (see TODO at top)
    p["enc0_conv"] = init_conv_im2col(kg, 3, 3, 32);       p["enc0_bn"] = init_bn(32)
    p["enc1a_conv"] = init_conv_tap(kg, 3, _seg(32), 32);  p["enc1a_bn"] = init_bn(32)
    p["enc1b_conv"] = init_conv_tap(kg, 3, _seg(32), 64);  p["enc1b_bn"] = init_bn(64)
    p["enc2a_conv"] = init_conv_1x1(kg, _seg(64), 80);     p["enc2a_bn"] = init_bn(80)
    p["enc2b_conv"] = init_conv_tap(kg, 3, _seg(80), 192); p["enc2b_bn"] = init_bn(192)
    p["enc3_conv"] = init_conv_1x1(kg, _seg(192), 1088);   p["enc3_bn"] = init_bn(1088)
    p["enc4_conv"] = init_conv_1x1(kg, _seg(1088), 2080);  p["enc4_bn"] = init_bn(2080)
    p["lateral4"] = init_conv_1x1(kg, _seg(2080), n)
    p["lateral3"] = init_conv_1x1(kg, _seg(1088), n)
    p["lateral2"] = init_conv_1x1(kg, _seg(192), n)
    p["lateral1"] = init_conv_1x1(kg, _seg(64), n)
    p["lateral0"] = init_conv_1x1(kg, _seg(32), n)
    p["td1_conv"] = init_conv_tap(kg, 3, _seg(n), n); p["td1_bn"] = init_bn(n)
    p["td2_conv"] = init_conv_tap(kg, 3, _seg(n), n); p["td2_bn"] = init_bn(n)
    p["td3_conv"] = init_conv_tap(kg, 3, _seg(n), n); p["td3_bn"] = init_bn(n)
    return p


def init_fpn_head(kg, n_in, n_mid, n_out):
    return {"b0": init_conv_tap(kg, 3, _seg(n_in), n_mid),
            "b1": init_conv_tap(kg, 3, _seg(n_mid), n_out)}


def init_fpn_inception(kg, n):
    p = {"fpn": init_fpn(kg, n)}
    p["head1"] = init_fpn_head(kg, n, n, n)
    p["head2"] = init_fpn_head(kg, n, n, n)
    p["head3"] = init_fpn_head(kg, n, n, n)
    p["head4"] = init_fpn_head(kg, n, n, n)
    p["smooth_conv"] = init_conv_tap(kg, 3, _seg(n) * 4, n); p["smooth_bn"] = init_bn(n)
    p["smooth2_conv"] = init_conv_tap(kg, 3, _seg(n), n // 2)
    p["smooth2_bn"] = init_bn(n // 2)
    p["final"] = init_conv_tap(kg, 3, _seg(n // 2), 3)
    p["final2"] = init_conv_1x1(kg, _seg(3), n)
    return p


def init_mspl(key, in_channels=3, out_channels=3, n_feats=16):
    kg = KeyGen(key)
    p = {"from_rgb": init_conv_1x1(kg, _seg(in_channels), n_feats)}
    for i in range(4):
        p[f"net{i}"] = init_fpn_inception(kg, n_feats)
        p[f"to_rgb{i}"] = init_conv_1x1(kg, _seg(n_feats), out_channels)
    return p


# ----------------------------------------------------------------------------
# Forward passes (mirror the PyTorch module structure)
# ----------------------------------------------------------------------------
def fpn_forward(p, x):
    x1 = conv1x1(p["toRGB"], x)                                  # n_feats -> 3
    # encoder (synthetic InceptionResNetV2 stand-in, same shape contract)
    enc0 = bn_relu(p["enc0_bn"],
                   conv_im2col_strided(p["enc0_conv"], x1, 3, 2, 3))
    e = bn_relu(p["enc1a_bn"], conv3x3(p["enc1a_conv"], enc0, padding=0))
    e = bn_relu(p["enc1b_bn"], conv3x3(p["enc1b_conv"], e, padding=1))
    enc1 = maxpool3x3s2(e)
    e = bn_relu(p["enc2a_bn"], conv1x1(p["enc2a_conv"], enc1))
    e = bn_relu(p["enc2b_bn"], conv3x3(p["enc2b_conv"], e, padding=0))
    enc2 = maxpool3x3s2(e)
    enc3 = bn_relu(p["enc3_bn"], conv1x1(p["enc3_conv"], maxpool3x3s2(enc2)))
    enc4 = bn_relu(p["enc4_bn"], conv1x1(p["enc4_conv"], maxpool3x3s2(enc3)))

    lateral4 = reflect_pad(conv1x1(p["lateral4"], enc4), (1, 1), (1, 1))
    lateral3 = reflect_pad(conv1x1(p["lateral3"], enc3), (1, 1), (1, 1))
    lateral2 = conv1x1(p["lateral2"], enc2)
    lateral1 = reflect_pad(conv1x1(p["lateral1"], enc1), (1, 1), (1, 1))
    lateral0 = conv1x1(p["lateral0"], enc0)

    map4 = lateral4
    map3 = bn_relu(p["td1_bn"],
                   conv3x3(p["td1_conv"],
                           lateral3 + upsample_nearest(map4, 2), padding=1))
    map2 = bn_relu(p["td2_bn"],
                   conv3x3(p["td2_conv"],
                           reflect_pad(lateral2, (1, 2), (1, 2))
                           + upsample_nearest(map3, 2), padding=1))
    map1 = bn_relu(p["td3_bn"],
                   conv3x3(p["td3_conv"],
                           lateral1 + upsample_nearest(map2, 2), padding=1))
    map0 = reflect_pad(lateral0, (0, 1), (0, 1))
    return map0, map1, map2, map3, map4


def fpn_head_forward(p, x):
    x = conv3x3(p["b0"], x, padding=1, act="relu")
    x = conv3x3(p["b1"], x, padding=1, act="relu")
    return x


def fpn_inception_forward(p, x, x1):
    map0, map1, map2, map3, map4 = fpn_forward(p["fpn"], x)
    map4 = upsample_nearest(fpn_head_forward(p["head4"], map4), 8)
    map3 = upsample_nearest(fpn_head_forward(p["head3"], map3), 4)
    map2 = upsample_nearest(fpn_head_forward(p["head2"], map2), 2)
    map1 = fpn_head_forward(p["head1"], map1)
    smoothed = bn_relu(p["smooth_bn"],
                       conv3x3(p["smooth_conv"],
                               jnp.concatenate([map4, map3, map2, map1], axis=-1),
                               padding=1))
    smoothed = upsample_nearest(smoothed, 2)
    smoothed = bn_relu(p["smooth2_bn"],
                       conv3x3(p["smooth2_conv"], smoothed + map0, padding=1))
    smoothed = upsample_nearest(smoothed, 2)
    final = conv3x3(p["final"], smoothed, padding=1)
    res = final + x1
    res2 = conv1x1(p["final2"], res, act="tanh")
    return res2


# One compile, reused for all 4 nets (identical shapes/structure).
_fpn_net_jit = jax.jit(fpn_inception_forward)


@jax.jit
def _stem(p_from_rgb, x_nhwc):
    b, h, wd, c = x_nhwc.shape
    cp = _cp(c)
    xp = jnp.zeros((b, h, wd, cp), jnp.bfloat16)
    xp = xp.at[..., :c].set(x_nhwc.astype(jnp.bfloat16))
    feat = conv1x1(p_from_rgb, xp)
    return feat, xp


@functools.partial(jax.jit, static_argnums=(2,))
def _to_rgb(p, feat, cout):
    y = conv1x1(p, feat, act="tanh")
    return y[..., :cout].astype(jnp.float32)


def mspl_forward(params, x_nhwc, out_channels=3):
    """x_nhwc: (B, H, W, 3) f32. Returns 4 NHWC outputs (B, H, W, 3) f32."""
    feat, xp = _stem(params["from_rgb"], x_nhwc)
    feats = []
    for i in range(4):
        feat = _fpn_net_jit(params[f"net{i}"], feat, xp)
        feats.append(feat)
    return tuple(_to_rgb(params[f"to_rgb{i}"], feats[i], out_channels)
                 for i in range(4))


# ----------------------------------------------------------------------------
if __name__ == "__main__":
    key = jax.random.PRNGKey(0)
    pkey, xkey = jax.random.split(key)

    # n_feats is a constructor argument (PyTorch default 128); use 16 to keep
    # the synthetic test small. 128x128 is the smallest spatial size compatible
    # with the Inception-style valid-padding downsampling chain used by FPN.
    params = init_mspl(pkey, in_channels=3, out_channels=3, n_feats=16)

    x_nchw = jax.random.normal(xkey, (1, 3, 128, 128), jnp.float32)
    x_nhwc = jnp.transpose(x_nchw, (0, 2, 3, 1))      # layout: NCHW -> NHWC

    outs = mspl_forward(params, x_nhwc)
    outs = tuple(jnp.transpose(o, (0, 3, 1, 2)) for o in outs)   # back to NCHW
    for o in outs:
        jax.block_until_ready(o)

    assert all(o.shape == (1, 3, 128, 128) for o in outs)
    assert all(bool(jnp.all(jnp.isfinite(o))) for o in outs)
    assert all(bool(jnp.all(jnp.abs(o) <= 1.0)) for o in outs)   # tanh-bounded
    print("KERNEL_OK")
</pallas_src>

<mosaic_0001>
module attributes {stable_mosaic.version = 11 : i64} {
  func.func @_matmul_bias_act_kernel(%arg0: i32, %arg1: memref<512x128xbf16, #tpu.memory_space<vmem>>, %arg2: memref<128x128xbf16, #tpu.memory_space<vmem>>, %arg3: memref<1x128xf32, #tpu.memory_space<vmem>>, %arg4: memref<512x128xbf16, #tpu.memory_space<vmem>>) attributes {dimension_semantics = [#tpu.dimension_semantics<parallel>], iteration_bounds = array<i64: 32>, scalar_prefetch = 0 : i64, scratch_operands = 0 : i64, tpu.core_type = #tpu.core_type<tc>, window_params = [{transform_indices = @transform_0, window_bounds = array<i64: 512, 128>}, {pipeline_mode = #tpu.pipeline_mode<synchronous>, transform_indices = @transform_1, window_bounds = array<i64: 128, 128>}, {pipeline_mode = #tpu.pipeline_mode<synchronous>, transform_indices = @transform_2, window_bounds = array<i64: 1, 128>}, {transform_indices = @transform_3, window_bounds = array<i64: 512, 128>}]} {
    %c0 = arith.constant 0 : index
    %c0_0 = arith.constant 0 : index
    %0 = vector.load %arg1[%c0, %c0_0] : memref<512x128xbf16, #tpu.memory_space<vmem>>, vector<512x128xbf16>
    %c0_1 = arith.constant 0 : index
    %c0_2 = arith.constant 0 : index
    %1 = vector.load %arg2[%c0_1, %c0_2] : memref<128x128xbf16, #tpu.memory_space<vmem>>, vector<128x128xbf16>
    %cst = arith.constant dense<0.000000e+00> : vector<512x128xf32>
    %2 = tpu.matmul %0, %1, %cst {dimension_numbers = #tpu.dot_dimension_numbers<[1], [0], [0], [1], [0, 0, 1, 1], [], []>} : vector<512x128xbf16>, vector<128x128xbf16>, vector<512x128xf32> -> vector<512x128xf32>
    %c0_3 = arith.constant 0 : index
    %c0_4 = arith.constant 0 : index
    %3 = vector.load %arg3[%c0_3, %c0_4] : memref<1x128xf32, #tpu.memory_space<vmem>>, vector<1x128xf32>
    %4 = vector.broadcast %3 : vector<1x128xf32> to vector<512x128xf32>
    %5 = arith.addf %2, %4 : vector<512x128xf32>
    %6 = arith.truncf %5 : vector<512x128xf32> to vector<512x128xbf16>
    %c0_5 = arith.constant 0 : index
    %c0_6 = arith.constant 0 : index
    %7 = vector.load %arg4[%c0_5, %c0_6] : memref<512x128xbf16, #tpu.memory_space<vmem>>, vector<512x128xbf16>
    tpu.vector_store %arg4[%c0_5, %c0_6], %6 {strides = array<i32>} : memref<512x128xbf16, #tpu.memory_space<vmem>>, vector<512x128xbf16>,
    return
  }
  func.func @transform_0(%arg0: i32) -> (i32, i32) {
    %c0_i32 = arith.constant 0 : i32
    %c0_i32_0 = arith.constant 0 : i32
    return %arg0, %c0_i32 : i32, i32
  }
  func.func @transform_1(%arg0: i32) -> (i32, i32) {
    %c0_i32 = arith.constant 0 : i32
    %c0_i32_0 = arith.constant 0 : i32
    %c0_i32_1 = arith.constant 0 : i32
    return %c0_i32, %c0_i32_0 : i32, i32
  }
  func.func @transform_2(%arg0: i32) -> (i32, i32) {
    %c0_i32 = arith.constant 0 : i32
    %c0_i32_0 = arith.constant 0 : i32
    %c0_i32_1 = arith.constant 0 : i32
    return %c0_i32, %c0_i32_0 : i32, i32
  }
  func.func @transform_3(%arg0: i32) -> (i32, i32) {
    %c0_i32 = arith.constant 0 : i32
    %c0_i32_0 = arith.constant 0 : i32
    return %arg0, %c0_i32 : i32, i32
  }
}

</mosaic_0001>

<llo_original>
// kernel: _stem.1
$region0: #{_stem.1}
  #allocation0 [shape = 'u32[]', space=smem, size = 0x4, offset = 0x4, fixed_abs, tag = 'smem constant byte address 0x4 - core index']
  #allocation1 [shape = 'u32[144,128]{1,0:T(1,128)}', space=vmem, size = 0x12000, scoped, tag = 'internal scratch']
  %s0 = inlined_call_operand.vmem [shape: bf16[16384,128], index: 0, kind: input, shape index: {}]
  %s1 = inlined_call_operand.vmem [shape: bf16[128,128], index: 1, kind: input, shape index: {}]
  %s2 = inlined_call_operand.vmem [shape: f32[1,128], index: 2, kind: input, shape index: {}]
  %s3 = inlined_call_operand.hbm [shape: bf16[16384,128], index: 3, kind: output, shape index: {}]
  %s4 = sld [smem:[#allocation0]]
  $region45: #{_stem.1} parent=0
    _
  %s6 = ssub.s32 1, %s4
  %s7 = scalar_select 0, %s6, %s4
  $region1: #{_stem.1} parent=0
    #allocation2 [shape = 'u8[262144]{0}', space=vmem, size = 0x40000, scoped, tag = 'output window, operand 0']
    #allocation3 [shape = 's32[2]{0}', space=sflag, size = 0x8, scoped, tag = 'scoped memory for _stem.1']
    %8 = vsyncpa [#allocation3], 0
    %s9 = scalar_lea.sflag [#allocation3], 1
    %10 = vsyncpa %s9, 0
    loop: start=0, step=1, limit=34
    $region2: #{_stem.1} parent=1 // loop_pre_header
      _
    $region3: #{_stem.1} parent=1 // loop_header
      %s12 = sphi 0, %s16
      %p13 = scmp.ge.s32.totalorder %s12, 34
      %s22 = sphi 0, %s24
      %s25 = sphi 0, %s22
      %s26 = sphi 0, %s25
      %s42 = sphi 0, %s26
      %s46 = sphi 0, %s46
      %s48 = sphi 0, %s46
      %s49 = sphi 0, %s48
      %s63 = sphi 0, %s49
      %s67 = sphi 0, %s67
      %s69 = sphi 0, %s67
      %s70 = sphi 0, %s69
      %s84 = sphi 0, %s70
      %s90 = sphi 0, %s92
      %s93 = sphi 0, %s90
      %s94 = sphi 0, %s93
      %s110 = sphi 0, %s94
    $region4: #{_stem.1} parent=1 // loop_header_branch
      %15 = sbr.rel (%p13) target = $region8
    $region5: #{_stem.1} parent=1 // loop_body
      %s17 = ssub.s32 %s12, 1
      %s18 = ssub.s32 %s12, 2
      %s19 = sadd.s32 %s12, 1
      %s20 = ssub.s32 %s12, %s19
      %p21 = scmp.eq.s32.totalorder %s20, 0
      %s23 = sadd.s32 %s22, 1
      %s24 = scalar_select %p21, %s22, %s23
      %p27 = pneg %p21
      %p28 = scmp.eq.s32.totalorder %s12, 31
      %p29 = por %p27, %p28
      %p30 = scmp.ne.s32.totalorder %s22, %s25
      %p31 = scmp.eq.s32.totalorder %s12, 0
      %p32 = por %p30, %p31
      %p33 = scmp.ne.s32.totalorder %s22, %s25
      %p34 = scmp.eq.s32.totalorder %s17, 31
      %p35 = por %p33, %p34
      %p36 = scmp.ne.s32.totalorder %s25, %s26
      %p37 = scmp.eq.s32.totalorder %s17, 0
      %p38 = por %p36, %p37
      %p39 = scmp.ne.s32.totalorder %s25, %s26
      %p40 = scmp.eq.s32.totalorder %s18, 31
      %p41 = por %p39, %p40
      %p43 = scmp.ne.s32.totalorder %s26, %s42
      %p44 = scmp.eq.s32.totalorder %s18, 0
      %p45 = por %p43, %p44
      %s47 = sadd.s32 %s46, 1
      %p50 = scmp.eq.s32.totalorder %s12, 31
      %p51 = scmp.ne.s32.totalorder %s46, %s48
      %p52 = scmp.eq.s32.totalorder %s12, 0
      %p53 = por %p51, %p52
      %p54 = scmp.ne.s32.totalorder %s46, %s48
      %p55 = scmp.eq.s32.totalorder %s17, 31
      %p56 = por %p54, %p55
      %p57 = scmp.ne.s32.totalorder %s48, %s49
      %p58 = scmp.eq.s32.totalorder %s17, 0
      %p59 = por %p57, %p58
      %p60 = scmp.ne.s32.totalorder %s48, %s49
      %p61 = scmp.eq.s32.totalorder %s18, 31
      %p62 = por %p60, %p61
      %p64 = scmp.ne.s32.totalorder %s49, %s63
      %p65 = scmp.eq.s32.totalorder %s18, 0
      %p66 = por %p64, %p65
      %s68 = sadd.s32 %s67, 1
      %p71 = scmp.eq.s32.totalorder %s12, 31
      %p72 = scmp.ne.s32.totalorder %s67, %s69
      %p73 = scmp.eq.s32.totalorder %s12, 0
      %p74 = por %p72, %p73
      %p75 = scmp.ne.s32.totalorder %s67, %s69
      %p76 = scmp.eq.s32.totalorder %s17, 31
      %p77 = por %p75, %p76
      %p78 = scmp.ne.s32.totalorder %s69, %s70
      %p79 = scmp.eq.s32.totalorder %s17, 0
      %p80 = por %p78, %p79
      %p81 = scmp.ne.s32.totalorder %s69, %s70
      %p82 = scmp.eq.s32.totalorder %s18, 31
      %p83 = por %p81, %p82
      %p85 = scmp.ne.s32.totalorder %s70, %s84
      %p86 = scmp.eq.s32.totalorder %s18, 0
      %p87 = por %p85, %p86
      %s88 = ssub.s32 %s12, %s19
      %p89 = scmp.eq.s32.totalorder %s88, 0
      %s91 = sadd.s32 %s90, 1
      %s92 = scalar_select %p89, %s90, %s91
      %p95 = pneg %p89
      %p96 = scmp.eq.s32.totalorder %s12, 31
      %p97 = por %p95, %p96
      %p98 = scmp.ne.s32.totalorder %s90, %s93
      %p99 = scmp.eq.s32.totalorder %s12, 0
      %p100 = por %p98, %p99
      %p101 = scmp.ne.s32.totalorder %s90, %s93
      %p102 = scmp.eq.s32.totalorder %s17, 31
      %p103 = por %p101, %p102
      %p104 = scmp.ne.s32.totalorder %s93, %s94
      %p105 = scmp.eq.s32.totalorder %s17, 0
      %p106 = por %p104, %p105
      %p107 = scmp.ne.s32.totalorder %s93, %s94
      %p108 = scmp.eq.s32.totalorder %s18, 31
      %p109 = por %p107, %p108
      %p111 = scmp.ne.s32.totalorder %s94, %s110
      %p112 = scmp.eq.s32.totalorder %s18, 0
      %p113 = por %p111, %p112
      %p114 = scmp.le.s32.totalorder 1, %s12
      %p115 = scmp.lt.s32.totalorder %s12, 33
      %p116 = pnand %p114, %p115
      %p117 = pneg %p116
      // Predicated region
      $region9: #{_stem.1} parent=5 // pred_check
        _
      $region10: #{_stem.1} parent=5 // pred_check_branch
        %119 = sbr.rel (%p116) target = $region12
      $region11: #{_stem.1} parent=5 // pred_region
        %s120 = ssub.s32 %s12, 1
        // Predicated region
        $region13: #{_stem.1} parent=11 // pred_check
          %p121 = pneg %p59
        $region14: #{_stem.1} parent=11 // pred_check_branch
          %123 = sbr.rel (%p121) target = $region16
        $region15: #{_stem.1} parent=11 // pred_region
          _
        $region16: #{_stem.1} parent=11 // pred_fallthru
          _
        // Predicated region
        $region17: #{_stem.1} parent=11 // pred_check
          %p124 = pneg %p80
        $region18: #{_stem.1} parent=11 // pred_check_branch
          %126 = sbr.rel (%p124) target = $region20
        $region19: #{_stem.1} parent=11 // pred_region
          _
        $region20: #{_stem.1} parent=11 // pred_fallthru
          _
      $region12: #{_stem.1} parent=5 // pred_fallthru
        _
      %p127 = scmp.lt.s32.totalorder %s12, 32
      // Predicated region
      $region21: #{_stem.1} parent=5 // pred_check
        %p128 = pneg %p127
      $region22: #{_stem.1} parent=5 // pred_check_branch
        %130 = sbr.rel (%p128) target = $region24
      $region23: #{_stem.1} parent=5 // pred_region
        // Predicated region
        $region25: #{_stem.1} parent=23 // pred_check
          %p131 = pneg %p32
        $region26: #{_stem.1} parent=23 // pred_check_branch
          %133 = sbr.rel (%p131) target = $region28
        $region27: #{_stem.1} parent=23 // pred_region
          %s134 = smul.u32 64, %s12
          %p135 = scmp.lt.s32.totalorder %s134, 2047
          %s136 = scalar_select %p135, %s134, 2047
          %s137 = smul.addr %s136, 4
          %s138 = scalar_lea.vmem %s0, %s137
          %s139 = smul.u32 64, %s12
        $region28: #{_stem.1} parent=23 // pred_fallthru
          _
      $region24: #{_stem.1} parent=5 // pred_fallthru
        _
      %p140 = scmp.le.s32.totalorder 1, %s12
      %p141 = scmp.lt.s32.totalorder %s12, 33
      %p142 = pnand %p140, %p141
      %p143 = pneg %p142
      // Predicated region
      $region29: #{_stem.1} parent=5 // pred_check
        _
      $region30: #{_stem.1} parent=5 // pred_check_branch
        %145 = sbr.rel (%p142) target = $region32
      $region31: #{_stem.1} parent=5 // pred_region
        %s146 = ssub.s32 %s12, 1
        %s147 = smul.u32 64, %s17
        %p148 = scmp.lt.s32.totalorder %s147, 2047
        %s149 = scalar_select %p148, %s147, 2047
        %s150 = smul.addr %s149, 4
        %s151 = scalar_lea.vmem %s0, %s150
        %p152 = pneg %p38
        %p153 = pneg %p35
        %p154 = pneg %p59
        %p155 = pneg %p56
        %p156 = pneg %p80
        %p157 = pneg %p77
        %p158 = pneg %p106
        %p159 = pneg %p103
        %s160 = sand.u32 %s93, 1
        %s161 = scalar_lea.sflag [#allocation3], %s160
        %s162 = sand.u32 %s93, 1
        %s163 = smul.addr %s162, 256
        %s164 = scalar_lea.vmem [#allocation2], %s163
        %s165 = smul.u32 64, %s17
        %p166 = scmp.lt.s32.totalorder %s165, 2047
        %s167 = scalar_select %p166, %s165, 2047
        %s168 = smul.addr %s167, 4
        %s169 = scalar_lea.vmem %s0, %s168
        %s170 = smul.u32 64, %s17
        %s171 = smul.u32 64, %s17
        %v173 = vld [vmem:[%s169] sm:$0xf]
        %v174 = vld [vmem:[%s169 + $0x4] sm:$0xf]
        %v175 = vld [vmem:[%s169 + $0x8] sm:$0xf]
        %v176 = vld [vmem:[%s169 + $0xc] sm:$0xf]
        %v177 = vld [vmem:[%s169 + $0x10] sm:$0xf]
        %v178 = vld [vmem:[%s169 + $0x14] sm:$0xf]
        %v179 = vld [vmem:[%s169 + $0x18] sm:$0xf]
        %v180 = vld [vmem:[%s169 + $0x1c] sm:$0xf]
        %v181 = vld [vmem:[%s169 + $0x20] sm:$0xf]
        %v182 = vld [vmem:[%s169 + $0x24] sm:$0xf]
        %v183 = vld [vmem:[%s169 + $0x28] sm:$0xf]
        %v184 = vld [vmem:[%s169 + $0x2c] sm:$0xf]
        %v185 = vld [vmem:[%s169 + $0x30] sm:$0xf]
        %v186 = vld [vmem:[%s169 + $0x34] sm:$0xf]
        %v187 = vld [vmem:[%s169 + $0x38] sm:$0xf]
        %v188 = vld [vmem:[%s169 + $0x3c] sm:$0xf]
        %v189 = vld [vmem:[%s169 + $0x40] sm:$0xf]
        %v190 = vld [vmem:[%s169 + $0x44] sm:$0xf]
        %v191 = vld [vmem:[%s169 + $0x48] sm:$0xf]
        %v192 = vld [vmem:[%s169 + $0x4c] sm:$0xf]
        %v193 = vld [vmem:[%s169 + $0x50] sm:$0xf]
        %v194 = vld [vmem:[%s169 + $0x54] sm:$0xf]
        %v195 = vld [vmem:[%s169 + $0x58] sm:$0xf]
        %v196 = vld [vmem:[%s169 + $0x5c] sm:$0xf]
        %v197 = vld [vmem:[%s169 + $0x60] sm:$0xf]
        %v198 = vld [vmem:[%s169 + $0x64] sm:$0xf]
        %v199 = vld [vmem:[%s169 + $0x68] sm:$0xf]
        %v200 = vld [vmem:[%s169 + $0x6c] sm:$0xf]
        %v201 = vld [vmem:[%s169 + $0x70] sm:$0xf]
        %v202 = vld [vmem:[%s169 + $0x74] sm:$0xf]
        %v203 = vld [vmem:[%s169 + $0x78] sm:$0xf]
        %v204 = vld [vmem:[%s169 + $0x7c] sm:$0xf]
        %v205 = vld [vmem:[%s169 + $0x80] sm:$0xf]
        %v206 = vld [vmem:[%s169 + $0x84] sm:$0xf]
        %v207 = vld [vmem:[%s169 + $0x88] sm:$0xf]
        %v208 = vld [vmem:[%s169 + $0x8c] sm:$0xf]
        %v209 = vld [vmem:[%s169 + $0x90] sm:$0xf]
        %v210 = vld [vmem:[%s169 + $0x94] sm:$0xf]
        %v211 = vld [vmem:[%s169 + $0x98] sm:$0xf]
        %v212 = vld [vmem:[%s169 + $0x9c] sm:$0xf]
        %v213 = vld [vmem:[%s169 + $0xa0] sm:$0xf]
        %v214 = vld [vmem:[%s169 + $0xa4] sm:$0xf]
        %v215 = vld [vmem:[%s169 + $0xa8] sm:$0xf]
        %v216 = vld [vmem:[%s169 + $0xac] sm:$0xf]
        %v217 = vld [vmem:[%s169 + $0xb0] sm:$0xf]
        %v218 = vld [vmem:[%s169 + $0xb4] sm:$0xf]
        %v219 = vld [vmem:[%s169 + $0xb8] sm:$0xf]
        %v220 = vld [vmem:[%s169 + $0xbc] sm:$0xf]
        %v221 = vld [vmem:[%s169 + $0xc0] sm:$0xf]
        %v222 = vld [vmem:[%s169 + $0xc4] sm:$0xf]
        %v223 = vld [vmem:[%s169 + $0xc8] sm:$0xf]
        %v224 = vld [vmem:[%s169 + $0xcc] sm:$0xf]
        %v225 = vld [vmem:[%s169 + $0xd0] sm:$0xf]
        %v226 = vld [vmem:[%s169 + $0xd4] sm:$0xf]
        %v227 = vld [vmem:[%s169 + $0xd8] sm:$0xf]
        %v228 = vld [vmem:[%s169 + $0xdc] sm:$0xf]
        %v229 = vld [vmem:[%s169 + $0xe0] sm:$0xf]
        %v230 = vld [vmem:[%s169 + $0xe4] sm:$0xf]
        %v231 = vld [vmem:[%s169 + $0xe8] sm:$0xf]
        %v232 = vld [vmem:[%s169 + $0xec] sm:$0xf]
        %v233 = vld [vmem:[%s169 + $0xf0] sm:$0xf]
        %v234 = vld [vmem:[%s169 + $0xf4] sm:$0xf]
        %v235 = vld [vmem:[%s169 + $0xf8] sm:$0xf]
        %v236 = vld [vmem:[%s169 + $0xfc] sm:$0xf]
        %v237 = vld [vmem:[%s1] sm:$0xf]
        %v238 = vld [vmem:[%s1 + $0x4] sm:$0xf]
        %v239 = vld [vmem:[%s1 + $0x8] sm:$0xf]
        %v240 = vld [vmem:[%s1 + $0xc] sm:$0xf]
        %v241 = vld [vmem:[%s1 + $0x10] sm:$0xf]
        %v242 = vld [vmem:[%s1 + $0x14] sm:$0xf]
        %v243 = vld [vmem:[%s1 + $0x18] sm:$0xf]
        %v244 = vld [vmem:[%s1 + $0x1c] sm:$0xf]
        %v245 = vld [vmem:[%s1 + $0x20] sm:$0xf]
        %v246 = vld [vmem:[%s1 + $0x24] sm:$0xf]
        %v247 = vld [vmem:[%s1 + $0x28] sm:$0xf]
        %v248 = vld [vmem:[%s1 + $0x2c] sm:$0xf]
        %v249 = vld [vmem:[%s1 + $0x30] sm:$0xf]
        %v250 = vld [vmem:[%s1 + $0x34] sm:$0xf]
        %v251 = vld [vmem:[%s1 + $0x38] sm:$0xf]
        %v252 = vld [vmem:[%s1 + $0x3c] sm:$0xf]
        %v253 = vld [vmem:[%s2] sm:$0x1]
        %v255 = vlaneseq
        %v256 = vshrl.u32 %v255, 7
        %v257 = vsub.s32 0, %v256
        %v258 = vrot.slane %v253, %v257
        %v324 = vunpack.c.l.b16 %v173
        %v325 = vunpack.c.l.b16 %v174
        %v326 = vunpack.c.l.b16 %v175
        %v327 = vunpack.c.l.b16 %v176
        %v328 = vunpack.c.l.b16 %v177
        %v329 = vunpack.c.l.b16 %v178
        %v330 = vunpack.c.l.b16 %v179
        %v331 = vunpack.c.l.b16 %v180
        %v332 = vunpack.c.l.b16 %v181
        %v333 = vunpack.c.l.b16 %v182
        %v334 = vunpack.c.l.b16 %v183
        %v335 = vunpack.c.l.b16 %v184
        %v336 = vunpack.c.l.b16 %v185
        %v337 = vunpack.c.l.b16 %v186
        %v338 = vunpack.c.l.b16 %v187
        %v339 = vunpack.c.l.b16 %v188
        %v340 = vunpack.c.l.b16 %v189
        %v341 = vunpack.c.l.b16 %v190
        %v342 = vunpack.c.l.b16 %v191
        %v343 = vunpack.c.l.b16 %v192
        %v344 = vunpack.c.l.b16 %v193
        %v345 = vunpack.c.l.b16 %v194
        %v346 = vunpack.c.l.b16 %v195
        %v347 = vunpack.c.l.b16 %v196
        %v348 = vunpack.c.l.b16 %v197
        %v349 = vunpack.c.l.b16 %v198
        %v350 = vunpack.c.l.b16 %v199
        %v351 = vunpack.c.l.b16 %v200
        %v352 = vunpack.c.l.b16 %v201
        %v353 = vunpack.c.l.b16 %v202
        %v354 = vunpack.c.l.b16 %v203
        %v355 = vunpack.c.l.b16 %v204
        %v356 = vunpack.c.l.b16 %v205
        %v357 = vunpack.c.l.b16 %v206
        %v358 = vunpack.c.l.b16 %v207
        %v359 = vunpack.c.l.b16 %v208
        %v360 = vunpack.c.l.b16 %v209
        %v361 = vunpack.c.l.b16 %v210
        %v362 = vunpack.c.l.b16 %v211
        %v363 = vunpack.c.l.b16 %v212
        %v364 = vunpack.c.l.b16 %v213
        %v365 = vunpack.c.l.b16 %v214
        %v366 = vunpack.c.l.b16 %v215
        %v367 = vunpack.c.l.b16 %v216
        %v368 = vunpack.c.l.b16 %v217
        %v369 = vunpack.c.l.b16 %v218
        %v370 = vunpack.c.l.b16 %v219
        %v371 = vunpack.c.l.b16 %v220
        %v372 = vunpack.c.l.b16 %v221
        %v373 = vunpack.c.l.b16 %v222
        %v374 = vunpack.c.l.b16 %v223
        %v375 = vunpack.c.l.b16 %v224
        %v376 = vunpack.c.l.b16 %v225
        %v377 = vunpack.c.l.b16 %v226
        %v378 = vunpack.c.l.b16 %v227
        %v379 = vunpack.c.l.b16 %v228
        %v380 = vunpack.c.l.b16 %v229
        %v381 = vunpack.c.l.b16 %v230
        %v382 = vunpack.c.l.b16 %v231
        %v383 = vunpack.c.l.b16 %v232
        %v384 = vunpack.c.l.b16 %v233
        %v385 = vunpack.c.l.b16 %v234
        %v386 = vunpack.c.l.b16 %v235
        %v387 = vunpack.c.l.b16 %v236
        %v388 = vpack.c.b16 %v325, %v324
        %v389 = vpack.c.b16 %v327, %v326
        %v390 = vpack.c.b16 %v329, %v328
        %v391 = vpack.c.b16 %v331, %v330
        %v392 = vpack.c.b16 %v333, %v332
        %v393 = vpack.c.b16 %v335, %v334
        %v394 = vpack.c.b16 %v337, %v336
        %v395 = vpack.c.b16 %v339, %v338
        %v396 = vpack.c.b16 %v341, %v340
        %v397 = vpack.c.b16 %v343, %v342
        %v398 = vpack.c.b16 %v345, %v344
        %v399 = vpack.c.b16 %v347, %v346
        %v400 = vpack.c.b16 %v349, %v348
        %v401 = vpack.c.b16 %v351, %v350
        %v402 = vpack.c.b16 %v353, %v352
        %v403 = vpack.c.b16 %v355, %v354
        %v404 = vpack.c.b16 %v357, %v356
        %v405 = vpack.c.b16 %v359, %v358
        %v406 = vpack.c.b16 %v361, %v360
        %v407 = vpack.c.b16 %v363, %v362
        %v408 = vpack.c.b16 %v365, %v364
        %v409 = vpack.c.b16 %v367, %v366
        %v410 = vpack.c.b16 %v369, %v368
        %v411 = vpack.c.b16 %v371, %v370
        %v412 = vpack.c.b16 %v373, %v372
        %v413 = vpack.c.b16 %v375, %v374
        %v414 = vpack.c.b16 %v377, %v376
        %v415 = vpack.c.b16 %v379, %v378
        %v416 = vpack.c.b16 %v381, %v380
        %v417 = vpack.c.b16 %v383, %v382
        %v418 = vpack.c.b16 %v385, %v384
        %v419 = vpack.c.b16 %v387, %v386
        %v468 = vunpack.c.l.b16 %v237
        %v469 = vunpack.c.l.b16 %v238
        %v470 = vunpack.c.l.b16 %v239
        %v471 = vunpack.c.l.b16 %v240
        %v472 = vunpack.c.l.b16 %v241
        %v473 = vunpack.c.l.b16 %v242
        %v474 = vunpack.c.l.b16 %v243
        %v475 = vunpack.c.l.b16 %v244
        %v476 = vunpack.c.l.b16 %v245
        %v477 = vunpack.c.l.b16 %v246
        %v478 = vunpack.c.l.b16 %v247
        %v479 = vunpack.c.l.b16 %v248
        %v480 = vunpack.c.l.b16 %v249
        %v481 = vunpack.c.l.b16 %v250
        %v482 = vunpack.c.l.b16 %v251
        %v483 = vunpack.c.l.b16 %v252
        %v484 = vpack.c.b16 %v469, %v468
        %v485 = vpack.c.b16 %v471, %v470
        %v486 = vpack.c.b16 %v473, %v472
        %v487 = vpack.c.b16 %v475, %v474
        %v488 = vpack.c.b16 %v477, %v476
        %v489 = vpack.c.b16 %v479, %v478
        %v490 = vpack.c.b16 %v481, %v480
        %v491 = vpack.c.b16 %v483, %v482
        %500 = vmatprep.subr.bf16.mxu0 0
        %501 = vmatpush1.bf16.msra.mxu0 %v484
        %502 = vmatprep.subr.bf16.mxu0 0
        %503 = vmatpush1.bf16.msra.mxu0 %v485
        %504 = vmatprep.subr.bf16.mxu0 0
        %505 = vmatpush1.bf16.msra.mxu0 %v486
        %506 = vmatprep.subr.bf16.mxu0 0
        %507 = vmatpush1.bf16.msra.mxu0 %v487
        %508 = vmatprep.subr.bf16.mxu0 0
        %509 = vmatpush1.bf16.msra.mxu0 %v488
        %510 = vmatprep.subr.bf16.mxu0 0
        %511 = vmatpush1.bf16.msra.mxu0 %v489
        %512 = vmatprep.subr.bf16.mxu0 0
        %513 = vmatpush1.bf16.msra.mxu0 %v490
        %514 = vmatprep.subr.bf16.mxu0 0
        %515 = vmatpush1.bf16.msra.mxu0 %v491
        %516 = vmatprep.subr.bf16.mxu0 0
        %517 = vmatpush1.bf16.msra.mxu0 0
        %518 = vmatprep.subr.bf16.mxu0 0
        %519 = vmatpush1.bf16.msra.mxu0 0
        %520 = vmatprep.subr.bf16.mxu0 0
        %521 = vmatpush1.bf16.msra.mxu0 0
        %522 = vmatprep.subr.bf16.mxu0 0
        %523 = vmatpush1.bf16.msra.mxu0 0
        %524 = vmatprep.subr.bf16.mxu0 0
        %525 = vmatpush1.bf16.msra.mxu0 0
        %526 = vmatprep.subr.bf16.mxu0 0
        %527 = vmatpush1.bf16.msra.mxu0 0
        %528 = vmatprep.subr.bf16.mxu0 0
        %529 = vmatpush1.bf16.msra.mxu0 0
        %530 = vmatprep.subr.bf16.mxu0 0
        %531 = vmatpush1.bf16.msra.mxu0 0
        %532 = vmatprep.mubr.bf16.mxu0 0
        %533 = vmatmul.mubr.bf16.gmra.mrb[0].mxu0 %v388
        %v534 = vpop.f32.mrb[0].mxu0
        %v535 = vadd.f32 %v258, %v534
        %v536 = vpop.f32.mrb[0].mxu0
        %v537 = vpop.f32.mrb[0].mxu0
        %v538 = vadd.f32 %v258, %v537
        %v539 = vpop.f32.mrb[0].mxu0
        %540 = vmatprep.mubr.bf16.mxu0 0
        %541 = vmatmul.mubr.bf16.gmra.mrb[0].mxu0 %v389
        %v542 = vpop.f32.mrb[0].mxu0
        %v543 = vadd.f32 %v258, %v542
        %v544 = vpop.f32.mrb[0].mxu0
        %v545 = vpop.f32.mrb[0].mxu0
        %v546 = vadd.f32 %v258, %v545
        %v547 = vpop.f32.mrb[0].mxu0
        %548 = vmatprep.mubr.bf16.mxu0 0
        %549 = vmatmul.mubr.bf16.gmra.mrb[0].mxu0 %v390
        %v550 = vpop.f32.mrb[0].mxu0
        %v551 = vadd.f32 %v258, %v550
        %v552 = vpop.f32.mrb[0].mxu0
        %v553 = vpop.f32.mrb[0].mxu0
        %v554 = vadd.f32 %v258, %v553
        %v555 = vpop.f32.mrb[0].mxu0
        %556 = vmatprep.mubr.bf16.mxu0 0
        %557 = vmatmul.mubr.bf16.gmra.mrb[0].mxu0 %v391
        %v558 = vpop.f32.mrb[0].mxu0
        %v559 = vadd.f32 %v258, %v558
        %v560 = vpop.f32.mrb[0].mxu0
        %v561 = vpop.f32.mrb[0].mxu0
        %v562 = vadd.f32 %v258, %v561
        %v563 = vpop.f32.mrb[0].mxu0
        %564 = vmatprep.mubr.bf16.mxu0 0
        %565 = vmatmul.mubr.bf16.gmra.mrb[0].mxu0 %v392
        %v566 = vpop.f32.mrb[0].mxu0
        %v567 = vadd.f32 %v258, %v566
        %v568 = vpop.f32.mrb[0].mxu0
        %v569 = vpop.f32.mrb[0].mxu0
        %v570 = vadd.f32 %v258, %v569
        %v571 = vpop.f32.mrb[0].mxu0
        %572 = vmatprep.mubr.bf16.mxu0 0
        %573 = vmatmul.mubr.bf16.gmra.mrb[0].mxu0 %v393
        %v574 = vpop.f32.mrb[0].mxu0
        %v575 = vadd.f32 %v258, %v574
        %v576 = vpop.f32.mrb[0].mxu0
        %v577 = vpop.f32.mrb[0].mxu0
        %v578 = vadd.f32 %v258, %v577
        %v579 = vpop.f32.mrb[0].mxu0
        %580 = vmatprep.mubr.bf16.mxu0 0
        %581 = vmatmul.mubr.bf16.gmra.mrb[0].mxu0 %v394
        %v582 = vpop.f32.mrb[0].mxu0
        %v583 = vadd.f32 %v258, %v582
        %v584 = vpop.f32.mrb[0].mxu0
        %v585 = vpop.f32.mrb[0].mxu0
        %v586 = vadd.f32 %v258, %v585
        %v587 = vpop.f32.mrb[0].mxu0
        %588 = vmatprep.mubr.bf16.mxu0 0
        %589 = vmatmul.mubr.bf16.gmra.mrb[0].mxu0 %v395
        %v590 = vpop.f32.mrb[0].mxu0
        %v591 = vadd.f32 %v258, %v590
        %v592 = vpop.f32.mrb[0].mxu0
        %v593 = vpop.f32.mrb[0].mxu0
        %v594 = vadd.f32 %v258, %v593
        %v595 = vpop.f32.mrb[0].mxu0
        %596 = vmatprep.mubr.bf16.mxu0 0
        %597 = vmatmul.mubr.bf16.gmra.mrb[0].mxu0 %v396
        %v598 = vpop.f32.mrb[0].mxu0
        %v599 = vadd.f32 %v258, %v598
        %v600 = vpop.f32.mrb[0].mxu0
        %v601 = vpop.f32.mrb[0].mxu0
        %v602 = vadd.f32 %v258, %v601
        %v603 = vpop.f32.mrb[0].mxu0
        %604 = vmatprep.mubr.bf16.mxu0 0
        %605 = vmatmul.mubr.bf16.gmra.mrb[0].mxu0 %v397
        %v606 = vpop.f32.mrb[0].mxu0
        %v607 = vadd.f32 %v258, %v606
        %v608 = vpop.f32.mrb[0].mxu0
        %v609 = vpop.f32.mrb[0].mxu0
        %v610 = vadd.f32 %v258, %v609
        %v611 = vpop.f32.mrb[0].mxu0
        %612 = vmatprep.mubr.bf16.mxu0 0
        %613 = vmatmul.mubr.bf16.gmra.mrb[0].mxu0 %v398
        %v614 = vpop.f32.mrb[0].mxu0
        %v615 = vadd.f32 %v258, %v614
        %v616 = vpop.f32.mrb[0].mxu0
        %v617 = vpop.f32.mrb[0].mxu0
        %v618 = vadd.f32 %v258, %v617
        %v619 = vpop.f32.mrb[0].mxu0
        %620 = vmatprep.mubr.bf16.mxu0 0
        %621 = vmatmul.mubr.bf16.gmra.mrb[0].mxu0 %v399
        %v622 = vpop.f32.mrb[0].mxu0
        %v623 = vadd.f32 %v258, %v622
        %v624 = vpop.f32.mrb[0].mxu0
        %v625 = vpop.f32.mrb[0].mxu0
        %v626 = vadd.f32 %v258, %v625
        %v627 = vpop.f32.mrb[0].mxu0
        %628 = vmatprep.mubr.bf16.mxu0 0
        %629 = vmatmul.mubr.bf16.gmra.mrb[0].mxu0 %v400
        %v630 = vpop.f32.mrb[0].mxu0
        %v631 = vadd.f32 %v258, %v630
        %v632 = vpop.f32.mrb[0].mxu0
        %v633 = vpop.f32.mrb[0].mxu0
        %v634 = vadd.f32 %v258, %v633
        %v635 = vpop.f32.mrb[0].mxu0
        %636 = vmatprep.mubr.bf16.mxu0 0
        %637 = vmatmul.mubr.bf16.gmra.mrb[0].mxu0 %v401
        %v638 = vpop.f32.mrb[0].mxu0
        %v639 = vadd.f32 %v258, %v638
        %v640 = vpop.f32.mrb[0].mxu0
        %v641 = vpop.f32.mrb[0].mxu0
        %v642 = vadd.f32 %v258, %v641
        %v643 = vpop.f32.mrb[0].mxu0
        %644 = vmatprep.mubr.bf16.mxu0 0
        %645 = vmatmul.mubr.bf16.gmra.mrb[0].mxu0 %v402
        %v646 = vpop.f32.mrb[0].mxu0
        %v647 = vadd.f32 %v258, %v646
        %v648 = vpop.f32.mrb[0].mxu0
        %v649 = vpop.f32.mrb[0].mxu0
        %v650 = vadd.f32 %v258, %v649
        %v651 = vpop.f32.mrb[0].mxu0
        %652 = vmatprep.mubr.bf16.mxu0 0
        %653 = vmatmul.mubr.bf16.gmra.mrb[0].mxu0 %v403
        %v654 = vpop.f32.mrb[0].mxu0
        %v655 = vadd.f32 %v258, %v654
        %v656 = vpop.f32.mrb[0].mxu0
        %v657 = vpop.f32.mrb[0].mxu0
        %v658 = vadd.f32 %v258, %v657
        %v659 = vpop.f32.mrb[0].mxu0
        %660 = vmatprep.mubr.bf16.mxu0 0
        %661 = vmatmul.mubr.bf16.gmra.mrb[0].mxu0 %v404
        %v662 = vpop.f32.mrb[0].mxu0
        %v663 = vadd.f32 %v258, %v662
        %v664 = vpop.f32.mrb[0].mxu0
        %v665 = vpop.f32.mrb[0].mxu0
        %v666 = vadd.f32 %v258, %v665
        %v667 = vpop.f32.mrb[0].mxu0
        %668 = vmatprep.mubr.bf16.mxu0 0
        %669 = vmatmul.mubr.bf16.gmra.mrb[0].mxu0 %v405
        %v670 = vpop.f32.mrb[0].mxu0
        %v671 = vadd.f32 %v258, %v670
        %v672 = vpop.f32.mrb[0].mxu0
        %v673 = vpop.f32.mrb[0].mxu0
        %v674 = vadd.f32 %v258, %v673
        %v675 = vpop.f32.mrb[0].mxu0
        %676 = vmatprep.mubr.bf16.mxu0 0
        %677 = vmatmul.mubr.bf16.gmra.mrb[0].mxu0 %v406
        %v678 = vpop.f32.mrb[0].mxu0
        %v679 = vadd.f32 %v258, %v678
        %v680 = vpop.f32.mrb[0].mxu0
        %v681 = vpop.f32.mrb[0].mxu0
        %v682 = vadd.f32 %v258, %v681
        %v683 = vpop.f32.mrb[0].mxu0
        %684 = vmatprep.mubr.bf16.mxu0 0
        %685 = vmatmul.mubr.bf16.gmra.mrb[0].mxu0 %v407
        %v686 = vpop.f32.mrb[0].mxu0
        %v687 = vadd.f32 %v258, %v686
        %v688 = vpop.f32.mrb[0].mxu0
        %v689 = vpop.f32.mrb[0].mxu0
        %v690 = vadd.f32 %v258, %v689
        %v691 = vpop.f32.mrb[0].mxu0
        %692 = vmatprep.mubr.bf16.mxu0 0
        %693 = vmatmul.mubr.bf16.gmra.mrb[0].mxu0 %v408
        %v694 = vpop.f32.mrb[0].mxu0
        %v695 = vadd.f32 %v258, %v694
        %v696 = vpop.f32.mrb[0].mxu0
        %v697 = vpop.f32.mrb[0].mxu0
        %v698 = vadd.f32 %v258, %v697
        %v699 = vpop.f32.mrb[0].mxu0
        %700 = vmatprep.mubr.bf16.mxu0 0
        %701 = vmatmul.mubr.bf16.gmra.mrb[0].mxu0 %v409
        %v702 = vpop.f32.mrb[0].mxu0
        %v703 = vadd.f32 %v258, %v702
        %v704 = vpop.f32.mrb[0].mxu0
        %v705 = vpop.f32.mrb[0].mxu0
        %v706 = vadd.f32 %v258, %v705
        %v707 = vpop.f32.mrb[0].mxu0
        %708 = vmatprep.mubr.bf16.mxu0 0
        %709 = vmatmul.mubr.bf16.gmra.mrb[0].mxu0 %v410
        %v710 = vpop.f32.mrb[0].mxu0
        %v711 = vadd.f32 %v258, %v710
        %v712 = vpop.f32.mrb[0].mxu0
        %v713 = vpop.f32.mrb[0].mxu0
        %v714 = vadd.f32 %v258, %v713
        %v715 = vpop.f32.mrb[0].mxu0
        %716 = vmatprep.mubr.bf16.mxu0 0
        %717 = vmatmul.mubr.bf16.gmra.mrb[0].mxu0 %v411
        %v718 = vpop.f32.mrb[0].mxu0
        %v719 = vadd.f32 %v258, %v718
        %v720 = vpop.f32.mrb[0].mxu0
        %v721 = vpop.f32.mrb[0].mxu0
        %v722 = vadd.f32 %v258, %v721
        %v723 = vpop.f32.mrb[0].mxu0
        %724 = vmatprep.mubr.bf16.mxu0 0
        %725 = vmatmul.mubr.bf16.gmra.mrb[0].mxu0 %v412
        %v726 = vpop.f32.mrb[0].mxu0
        %v727 = vadd.f32 %v258, %v726
        %v728 = vpop.f32.mrb[0].mxu0
        %v729 = vpop.f32.mrb[0].mxu0
        %v730 = vadd.f32 %v258, %v729
        %v731 = vpop.f32.mrb[0].mxu0
        %732 = vmatprep.mubr.bf16.mxu0 0
        %733 = vmatmul.mubr.bf16.gmra.mrb[0].mxu0 %v413
        %v734 = vpop.f32.mrb[0].mxu0
        %v735 = vadd.f32 %v258, %v734
        %v736 = vpop.f32.mrb[0].mxu0
        %v737 = vpop.f32.mrb[0].mxu0
        %v738 = vadd.f32 %v258, %v737
        %v739 = vpop.f32.mrb[0].mxu0
        %740 = vmatprep.mubr.bf16.mxu0 0
        %741 = vmatmul.mubr.bf16.gmra.mrb[0].mxu0 %v414
        %v742 = vpop.f32.mrb[0].mxu0
        %v743 = vadd.f32 %v258, %v742
        %v744 = vpop.f32.mrb[0].mxu0
        %v745 = vpop.f32.mrb[0].mxu0
        %v746 = vadd.f32 %v258, %v745
        %v747 = vpop.f32.mrb[0].mxu0
        %748 = vmatprep.mubr.bf16.mxu0 0
        %749 = vmatmul.mubr.bf16.gmra.mrb[0].mxu0 %v415
        %v750 = vpop.f32.mrb[0].mxu0
        %v751 = vadd.f32 %v258, %v750
        %v752 = vpop.f32.mrb[0].mxu0
        %v753 = vpop.f32.mrb[0].mxu0
        %v754 = vadd.f32 %v258, %v753
        %v755 = vpop.f32.mrb[0].mxu0
        %756 = vmatprep.mubr.bf16.mxu0 0
        %757 = vmatmul.mubr.bf16.gmra.mrb[0].mxu0 %v416
        %v758 = vpop.f32.mrb[0].mxu0
        %v759 = vadd.f32 %v258, %v758
        %v760 = vpop.f32.mrb[0].mxu0
        %v761 = vpop.f32.mrb[0].mxu0
        %v762 = vadd.f32 %v258, %v761
        %v763 = vpop.f32.mrb[0].mxu0
        %764 = vmatprep.mubr.bf16.mxu0 0
        %765 = vmatmul.mubr.bf16.gmra.mrb[0].mxu0 %v417
        %v766 = vpop.f32.mrb[0].mxu0
        %v767 = vadd.f32 %v258, %v766
        %v768 = vpop.f32.mrb[0].mxu0
        %v769 = vpop.f32.mrb[0].mxu0
        %v770 = vadd.f32 %v258, %v769
        %v771 = vpop.f32.mrb[0].mxu0
        %772 = vmatprep.mubr.bf16.mxu0 0
        %773 = vmatmul.mubr.bf16.gmra.mrb[0].mxu0 %v418
        %v774 = vpop.f32.mrb[0].mxu0
        %v775 = vadd.f32 %v258, %v774
        %v776 = vpop.f32.mrb[0].mxu0
        %v777 = vpop.f32.mrb[0].mxu0
        %v778 = vadd.f32 %v258, %v777
        %v779 = vpop.f32.mrb[0].mxu0
        %780 = vmatprep.mubr.bf16.mxu0 0
        %781 = vmatmul.mubr.bf16.gmra.mrb[0].mxu0 %v419
        %v782 = vpop.f32.mrb[0].mxu0
        %v783 = vadd.f32 %v258, %v782
        %v784 = vpop.f32.mrb[0].mxu0
        %v785 = vpop.f32.mrb[0].mxu0
        %v786 = vadd.f32 %v258, %v785
        %v787 = vpop.f32.mrb[0].mxu0
        %788 = vdwg.mxu0
        %v789 = vpack.c.bf16 %v538, %v535
        %v790 = vpack.c.bf16 %v546, %v543
        %v791 = vpack.c.bf16 %v554, %v551
        %v792 = vpack.c.bf16 %v562, %v559
        %v793 = vpack.c.bf16 %v570, %v567
        %v794 = vpack.c.bf16 %v578, %v575
        %v795 = vpack.c.bf16 %v586, %v583
        %v796 = vpack.c.bf16 %v594, %v591
        %v797 = vpack.c.bf16 %v602, %v599
        %v798 = vpack.c.bf16 %v610, %v607
        %v799 = vpack.c.bf16 %v618, %v615
        %v800 = vpack.c.bf16 %v626, %v623
        %v801 = vpack.c.bf16 %v634, %v631
        %v802 = vpack.c.bf16 %v642, %v639
        %v803 = vpack.c.bf16 %v650, %v647
        %v804 = vpack.c.bf16 %v658, %v655
        %v805 = vpack.c.bf16 %v666, %v663
        %v806 = vpack.c.bf16 %v674, %v671
        %v807 = vpack.c.bf16 %v682, %v679
        %v808 = vpack.c.bf16 %v690, %v687
        %v809 = vpack.c.bf16 %v698, %v695
        %v810 = vpack.c.bf16 %v706, %v703
        %v811 = vpack.c.bf16 %v714, %v711
        %v812 = vpack.c.bf16 %v722, %v719
        %v813 = vpack.c.bf16 %v730, %v727
        %v814 = vpack.c.bf16 %v738, %v735
        %v815 = vpack.c.bf16 %v746, %v743
        %v816 = vpack.c.bf16 %v754, %v751
        %v817 = vpack.c.bf16 %v762, %v759
        %v818 = vpack.c.bf16 %v770, %v767
        %v819 = vpack.c.bf16 %v778, %v775
        %v820 = vpack.c.bf16 %v786, %v783
        %v853 = vunpack.c.l.b16 %v789
        %v854 = vunpack.c.h.b16 %v789
        %v855 = vunpack.c.l.b16 %v790
        %v856 = vunpack.c.h.b16 %v790
        %v857 = vunpack.c.l.b16 %v791
        %v858 = vunpack.c.h.b16 %v791
        %v859 = vunpack.c.l.b16 %v792
        %v860 = vunpack.c.h.b16 %v792
        %v861 = vunpack.c.l.b16 %v793
        %v862 = vunpack.c.h.b16 %v793
        %v863 = vunpack.c.l.b16 %v794
        %v864 = vunpack.c.h.b16 %v794
        %v865 = vunpack.c.l.b16 %v795
        %v866 = vunpack.c.h.b16 %v795
        %v867 = vunpack.c.l.b16 %v796
        %v868 = vunpack.c.h.b16 %v796
        %v869 = vunpack.c.l.b16 %v797
        %v870 = vunpack.c.h.b16 %v797
        %v871 = vunpack.c.l.b16 %v798
        %v872 = vunpack.c.h.b16 %v798
        %v873 = vunpack.c.l.b16 %v799
        %v874 = vunpack.c.h.b16 %v799
        %v875 = vunpack.c.l.b16 %v800
        %v876 = vunpack.c.h.b16 %v800
        %v877 = vunpack.c.l.b16 %v801
        %v878 = vunpack.c.h.b16 %v801
        %v879 = vunpack.c.l.b16 %v802
        %v880 = vunpack.c.h.b16 %v802
        %v881 = vunpack.c.l.b16 %v803
        %v882 = vunpack.c.h.b16 %v803
        %v883 = vunpack.c.l.b16 %v804
        %v884 = vunpack.c.h.b16 %v804
        %v885 = vunpack.c.l.b16 %v805
        %v886 = vunpack.c.h.b16 %v805
        %v887 = vunpack.c.l.b16 %v806
        %v888 = vunpack.c.h.b16 %v806
        %v889 = vunpack.c.l.b16 %v807
        %v890 = vunpack.c.h.b16 %v807
        %v891 = vunpack.c.l.b16 %v808
        %v892 = vunpack.c.h.b16 %v808
        %v893 = vunpack.c.l.b16 %v809
        %v894 = vunpack.c.h.b16 %v809
        %v895 = vunpack.c.l.b16 %v810
        %v896 = vunpack.c.h.b16 %v810
        %v897 = vunpack.c.l.b16 %v811
        %v898 = vunpack.c.h.b16 %v811
        %v899 = vunpack.c.l.b16 %v812
        %v900 = vunpack.c.h.b16 %v812
        %v901 = vunpack.c.l.b16 %v813
        %v902 = vunpack.c.h.b16 %v813
        %v903 = vunpack.c.l.b16 %v814
        %v904 = vunpack.c.h.b16 %v814
        %v905 = vunpack.c.l.b16 %v815
        %v906 = vunpack.c.h.b16 %v815
        %v907 = vunpack.c.l.b16 %v816
        %v908 = vunpack.c.h.b16 %v816
        %v909 = vunpack.c.l.b16 %v817
        %v910 = vunpack.c.h.b16 %v817
        %v911 = vunpack.c.l.b16 %v818
        %v912 = vunpack.c.h.b16 %v818
        %v913 = vunpack.c.l.b16 %v819
        %v914 = vunpack.c.h.b16 %v819
        %v915 = vunpack.c.l.b16 %v820
        %v916 = vunpack.c.h.b16 %v820
        %v917 = vpack.c.b16 %v853, %v853
        %v918 = vpack.c.b16 %v854, %v854
        %v919 = vpack.c.b16 %v855, %v855
        %v920 = vpack.c.b16 %v856, %v856
        %v921 = vpack.c.b16 %v857, %v857
        %v922 = vpack.c.b16 %v858, %v858
        %v923 = vpack.c.b16 %v859, %v859
        %v924 = vpack.c.b16 %v860, %v860
        %v925 = vpack.c.b16 %v861, %v861
        %v926 = vpack.c.b16 %v862, %v862
        %v927 = vpack.c.b16 %v863, %v863
        %v928 = vpack.c.b16 %v864, %v864
        %v929 = vpack.c.b16 %v865, %v865
        %v930 = vpack.c.b16 %v866, %v866
        %v931 = vpack.c.b16 %v867, %v867
        %v932 = vpack.c.b16 %v868, %v868
        %v933 = vpack.c.b16 %v869, %v869
        %v934 = vpack.c.b16 %v870, %v870
        %v935 = vpack.c.b16 %v871, %v871
        %v936 = vpack.c.b16 %v872, %v872
        %v937 = vpack.c.b16 %v873, %v873
        %v938 = vpack.c.b16 %v874, %v874
        %v939 = vpack.c.b16 %v875, %v875
        %v940 = vpack.c.b16 %v876, %v876
        %v941 = vpack.c.b16 %v877, %v877
        %v942 = vpack.c.b16 %v878, %v878
        %v943 = vpack.c.b16 %v879, %v879
        %v944 = vpack.c.b16 %v880, %v880
        %v945 = vpack.c.b16 %v881, %v881
        %v946 = vpack.c.b16 %v882, %v882
        %v947 = vpack.c.b16 %v883, %v883
        %v948 = vpack.c.b16 %v884, %v884
        %v949 = vpack.c.b16 %v885, %v885
        %v950 = vpack.c.b16 %v886, %v886
        %v951 = vpack.c.b16 %v887, %v887
        %v952 = vpack.c.b16 %v888, %v888
        %v953 = vpack.c.b16 %v889, %v889
        %v954 = vpack.c.b16 %v890, %v890
        %v955 = vpack.c.b16 %v891, %v891
        %v956 = vpack.c.b16 %v892, %v892
        %v957 = vpack.c.b16 %v893, %v893
        %v958 = vpack.c.b16 %v894, %v894
        %v959 = vpack.c.b16 %v895, %v895
        %v960 = vpack.c.b16 %v896, %v896
        %v961 = vpack.c.b16 %v897, %v897
        %v962 = vpack.c.b16 %v898, %v898
        %v963 = vpack.c.b16 %v899, %v899
        %v964 = vpack.c.b16 %v900, %v900
        %v965 = vpack.c.b16 %v901, %v901
        %v966 = vpack.c.b16 %v902, %v902
        %v967 = vpack.c.b16 %v903, %v903
        %v968 = vpack.c.b16 %v904, %v904
        %v969 = vpack.c.b16 %v905, %v905
        %v970 = vpack.c.b16 %v906, %v906
        %v971 = vpack.c.b16 %v907, %v907
        %v972 = vpack.c.b16 %v908, %v908
        %v973 = vpack.c.b16 %v909, %v909
        %v974 = vpack.c.b16 %v910, %v910
        %v975 = vpack.c.b16 %v911, %v911
        %v976 = vpack.c.b16 %v912, %v912
        %v977 = vpack.c.b16 %v913, %v913
        %v978 = vpack.c.b16 %v914, %v914
        %v979 = vpack.c.b16 %v915, %v915
        %v980 = vpack.c.b16 %v916, %v916
        %1045 = vst [vmem:[%s164] sm:$0xf] %v917
        %1046 = vst [vmem:[%s164 + $0x4] sm:$0xf] %v918
        %1047 = vst [vmem:[%s164 + $0x8] sm:$0xf] %v919
        %1048 = vst [vmem:[%s164 + $0xc] sm:$0xf] %v920
        %1049 = vst [vmem:[%s164 + $0x10] sm:$0xf] %v921
        %1050 = vst [vmem:[%s164 + $0x14] sm:$0xf] %v922
        %1051 = vst [vmem:[%s164 + $0x18] sm:$0xf] %v923
        %1052 = vst [vmem:[%s164 + $0x1c] sm:$0xf] %v924
        %1053 = vst [vmem:[%s164 + $0x20] sm:$0xf] %v925
        %1054 = vst [vmem:[%s164 + $0x24] sm:$0xf] %v926
        %1055 = vst [vmem:[%s164 + $0x28] sm:$0xf] %v927
        %1056 = vst [vmem:[%s164 + $0x2c] sm:$0xf] %v928
        %1057 = vst [vmem:[%s164 + $0x30] sm:$0xf] %v929
        %1058 = vst [vmem:[%s164 + $0x34] sm:$0xf] %v930
        %1059 = vst [vmem:[%s164 + $0x38] sm:$0xf] %v931
        %1060 = vst [vmem:[%s164 + $0x3c] sm:$0xf] %v932
        %1061 = vst [vmem:[%s164 + $0x40] sm:$0xf] %v933
        %1062 = vst [vmem:[%s164 + $0x44] sm:$0xf] %v934
        %1063 = vst [vmem:[%s164 + $0x48] sm:$0xf] %v935
        %1064 = vst [vmem:[%s164 + $0x4c] sm:$0xf] %v936
        %1065 = vst [vmem:[%s164 + $0x50] sm:$0xf] %v937
        %1066 = vst [vmem:[%s164 + $0x54] sm:$0xf] %v938
        %1067 = vst [vmem:[%s164 + $0x58] sm:$0xf] %v939
        %1068 = vst [vmem:[%s164 + $0x5c] sm:$0xf] %v940
        %1069 = vst [vmem:[%s164 + $0x60] sm:$0xf] %v941
        %1070 = vst [vmem:[%s164 + $0x64] sm:$0xf] %v942
        %1071 = vst [vmem:[%s164 + $0x68] sm:$0xf] %v943
        %1072 = vst [vmem:[%s164 + $0x6c] sm:$0xf] %v944
        %1073 = vst [vmem:[%s164 + $0x70] sm:$0xf] %v945
        %1074 = vst [vmem:[%s164 + $0x74] sm:$0xf] %v946
        %1075 = vst [vmem:[%s164 + $0x78] sm:$0xf] %v947
        %1076 = vst [vmem:[%s164 + $0x7c] sm:$0xf] %v948
        %1077 = vst [vmem:[%s164 + $0x80] sm:$0xf] %v949
        %1078 = vst [vmem:[%s164 + $0x84] sm:$0xf] %v950
        %1079 = vst [vmem:[%s164 + $0x88] sm:$0xf] %v951
        %1080 = vst [vmem:[%s164 + $0x8c] sm:$0xf] %v952
        %1081 = vst [vmem:[%s164 + $0x90] sm:$0xf] %v953
        %1082 = vst [vmem:[%s164 + $0x94] sm:$0xf] %v954
        %1083 = vst [vmem:[%s164 + $0x98] sm:$0xf] %v955
        %1084 = vst [vmem:[%s164 + $0x9c] sm:$0xf] %v956
        %1085 = vst [vmem:[%s164 + $0xa0] sm:$0xf] %v957
        %1086 = vst [vmem:[%s164 + $0xa4] sm:$0xf] %v958
        %1087 = vst [vmem:[%s164 + $0xa8] sm:$0xf] %v959
        %1088 = vst [vmem:[%s164 + $0xac] sm:$0xf] %v960
        %1089 = vst [vmem:[%s164 + $0xb0] sm:$0xf] %v961
        %1090 = vst [vmem:[%s164 + $0xb4] sm:$0xf] %v962
        %1091 = vst [vmem:[%s164 + $0xb8] sm:$0xf] %v963
        %1092 = vst [vmem:[%s164 + $0xbc] sm:$0xf] %v964
        %1093 = vst [vmem:[%s164 + $0xc0] sm:$0xf] %v965
        %1094 = vst [vmem:[%s164 + $0xc4] sm:$0xf] %v966
        %1095 = vst [vmem:[%s164 + $0xc8] sm:$0xf] %v967
        %1096 = vst [vmem:[%s164 + $0xcc] sm:$0xf] %v968
        %1097 = vst [vmem:[%s164 + $0xd0] sm:$0xf] %v969
        %1098 = vst [vmem:[%s164 + $0xd4] sm:$0xf] %v970
        %1099 = vst [vmem:[%s164 + $0xd8] sm:$0xf] %v971
        %1100 = vst [vmem:[%s164 + $0xdc] sm:$0xf] %v972
        %1101 = vst [vmem:[%s164 + $0xe0] sm:$0xf] %v973
        %1102 = vst [vmem:[%s164 + $0xe4] sm:$0xf] %v974
        %1103 = vst [vmem:[%s164 + $0xe8] sm:$0xf] %v975
        %1104 = vst [vmem:[%s164 + $0xec] sm:$0xf] %v976
        %1105 = vst [vmem:[%s164 + $0xf0] sm:$0xf] %v977
        %1106 = vst [vmem:[%s164 + $0xf4] sm:$0xf] %v978
        %1107 = vst [vmem:[%s164 + $0xf8] sm:$0xf] %v979
        %1108 = vst [vmem:[%s164 + $0xfc] sm:$0xf] %v980
        %s1109 = sand.u32 %s93, 1
        %s1110 = scalar_lea.sflag [#allocation3], %s1109
        %s1111 = sand.u32 %s93, 1
        %s1112 = smul.addr %s1111, 256
        %s1113 = scalar_lea.vmem [#allocation2], %s1112
        // Predicated region
        $region33: #{_stem.1} parent=31 // pred_check
          %p1114 = pneg %p103
        $region34: #{_stem.1} parent=31 // pred_check_branch
          %1116 = sbr.rel (%p1114) target = $region36
        $region35: #{_stem.1} parent=31 // pred_region
          %s1117 = smul.u32 64, %s17
          %s1119 = ssub.s32 4096, 4096
          %1120 = vsyncadd %s1110, %s1119
          %s1121 = smul.addr %s1117, 64
          %s1122 = scalar_lea.hbm %s3, %s1121
          %s1123 = sshll.u32 %s1113, 4
          %s1124 = int_to_ptr.vmem [resolvable:$true] %s1123
          %1129 = dma.vmem_to_hbm [thread:$0]  %s1124, 4096, %s1122, %s1110, 64, 64, 4
        $region36: #{_stem.1} parent=31 // pred_fallthru
          _
      $region32: #{_stem.1} parent=5 // pred_fallthru
        _
      %p1130 = scmp.le.s32.totalorder 2, %s12
      // Predicated region
      $region37: #{_stem.1} parent=5 // pred_check
        %p1131 = pneg %p1130
      $region38: #{_stem.1} parent=5 // pred_check_branch
        %1133 = sbr.rel (%p1131) target = $region40
      $region39: #{_stem.1} parent=5 // pred_region
        %s1134 = ssub.s32 %s12, 2
        // Predicated region
        $region41: #{_stem.1} parent=39 // pred_check
          %p1135 = pneg %p109
        $region42: #{_stem.1} parent=39 // pred_check_branch
          %1137 = sbr.rel (%p1135) target = $region44
        $region43: #{_stem.1} parent=39 // pred_region
          %s1138 = sand.u32 %s94, 1
          %s1139 = scalar_lea.sflag [#allocation3], %s1138
          %s1140 = sand.u32 %s94, 1
          %s1141 = smul.addr %s1140, 256
          %s1142 = scalar_lea.vmem [#allocation2], %s1141
          %1143 = dma.done %s1139, 4096
        $region44: #{_stem.1} parent=39 // pred_fallthru
          _
      $region40: #{_stem.1} parent=5 // pred_fallthru
        _
    $region6: #{_stem.1} parent=1 // loop_footer
      %s16 = sadd.s32 1, %s12
    $region7: #{_stem.1} parent=1 // loop_footer_branch
      %11 = sbr.rel target = $region3
    $region8: #{_stem.1} parent=1 // loop_exit
      _
    %1144 = vsyncpa [#allocation3], 1
    %s1145 = scalar_lea.sflag [#allocation3], 1
    %1146 = vsyncpa %s1145, 1

</llo_original>
